<compile_context>
chip_gen: v7x
topology: tpu7x:2x2x1
jax: 0.10.0
libtpu: 0.0.40
codegen_flags: <defaults>
</compile_context>

<pallas_src>
import functools

import jax
import jax.numpy as jnp
from jax import lax
from jax.experimental import pallas as pl
from jax.experimental.pallas import tpu as pltpu


# ----------------------------- kernels --------------------------------------


def layer1_kernel(l_ref, xk_ref, xi_ref, w10_ref, w11_ref, w21_ref, b1_ref,
                  h_ref, t1_ref, acc_ref):
    """ChebConv1 (K=2) + ReLU.  grid = (row_tiles, k_tiles), reduction last.

    acc accumulates (L_hat @ x)[row_tile] over k; at the last k step we apply
    the dense weights, bias, ReLU and also emit t1 = h @ W21 (reassociation
    for layer 2).
    """
    @pl.when(pl.program_id(1) == 0)
    def _():
        acc_ref[...] = jnp.zeros_like(acc_ref)

    # bf16 x bf16 -> f32 accumulate on the MXU.
    acc_ref[...] += jnp.dot(l_ref[...], xk_ref[...],
                            preferred_element_type=jnp.float32)

    @pl.when(pl.program_id(1) == pl.num_programs(1) - 1)
    def _():
        h = (jnp.dot(xi_ref[...], w10_ref[...],
                     preferred_element_type=jnp.float32)
             + jnp.dot(acc_ref[...].astype(jnp.bfloat16), w11_ref[...],
                       preferred_element_type=jnp.float32)
             + b1_ref[...])
        h = jnp.maximum(h, 0.0)                       # ReLU in f32 (v5e-safe)
        # TODO(synk): add training-mode dropout via pltpu.prng_random_bits if a
        #             training kernel is ever needed (eval mode == identity).
        hb = h.astype(jnp.bfloat16)
        h_ref[...] = hb
        # Reassociated layer-2 operand: t1 = h @ W21, width C_pad instead of H.
        t1_ref[...] = jnp.dot(hb, w21_ref[...],
                              preferred_element_type=jnp.float32
                              ).astype(jnp.bfloat16)


def layer2_kernel(num_classes, l_ref, t1k_ref, hi_ref, w20_ref, b2_ref,
                  o_ref, acc_ref):
    """ChebConv2 (K=2) + log_softmax.  acc accumulates L_hat @ (h @ W21)."""
    @pl.when(pl.program_id(1) == 0)
    def _():
        acc_ref[...] = jnp.zeros_like(acc_ref)

    acc_ref[...] += jnp.dot(l_ref[...], t1k_ref[...],
                            preferred_element_type=jnp.float32)

    @pl.when(pl.program_id(1) == pl.num_programs(1) - 1)
    def _():
        logits = (jnp.dot(hi_ref[...], w20_ref[...],
                          preferred_element_type=jnp.float32)
                  + acc_ref[...] + b2_ref[...])
        # Mask lane-padded class columns so they don't perturb log_softmax.
        col = lax.broadcasted_iota(jnp.int32, logits.shape, 1)
        logits = jnp.where(col < num_classes, logits, jnp.float32(-1e30))
        m = jnp.max(logits, axis=1, keepdims=True)
        z = logits - m
        lse = jnp.log(jnp.sum(jnp.exp(z), axis=1, keepdims=True))
        o_ref[...] = z - lse                          # f32 log-probs


# ----------------------------- wrapper ---------------------------------------


def _round_up(x, m):
    return ((x + m - 1) // m) * m


def _pick_tile(n_pad):
    for t in (512, 256, 128):
        if n_pad % t == 0:
            return t
    return 128


def _pad2(a, rows, cols):
    return jnp.pad(a, ((0, rows - a.shape[0]), (0, cols - a.shape[1])))


def chebnet_forward(l_hat, x, params):
    """Two tiled pallas_calls: ChebConv1+ReLU, then ChebConv2+log_softmax."""
    n, f = x.shape
    hid = params["w10"].shape[1]
    num_classes = params["w20"].shape[1]

    n_pad = _round_up(n, 128)
    tm = tk = _pick_tile(n_pad)
    f_pad = _round_up(f, 128)
    h_pad = _round_up(hid, 128)
    c_pad = _round_up(num_classes, 128)

    # Zero-pad to lane-dense shapes; bf16 for all MXU operands, f32 biases.
    l_p = _pad2(l_hat, n_pad, n_pad).astype(jnp.bfloat16)
    x_p = _pad2(x, n_pad, f_pad).astype(jnp.bfloat16)
    w10 = _pad2(params["w10"], f_pad, h_pad).astype(jnp.bfloat16)
    w11 = _pad2(params["w11"], f_pad, h_pad).astype(jnp.bfloat16)
    b1 = _pad2(params["b1"], 1, h_pad).astype(jnp.float32)
    w20 = _pad2(params["w20"], h_pad, c_pad).astype(jnp.bfloat16)
    w21 = _pad2(params["w21"], h_pad, c_pad).astype(jnp.bfloat16)
    b2 = _pad2(params["b2"], 1, c_pad).astype(jnp.float32)

    grid = (n_pad // tm, n_pad // tk)
    cparams = pltpu.CompilerParams(
        dimension_semantics=("parallel", "arbitrary"),
        vmem_limit_bytes=32 * 1024 * 1024,
    )

    # ---- layer 1: h = relu(x@W10 + (L@x)@W11 + b1);  t1 = h@W21 ----
    h_p, t1_p = pl.pallas_call(
        layer1_kernel,
        out_shape=(jax.ShapeDtypeStruct((n_pad, h_pad), jnp.bfloat16),
                   jax.ShapeDtypeStruct((n_pad, c_pad), jnp.bfloat16)),
        grid_spec=pltpu.PrefetchScalarGridSpec(
            num_scalar_prefetch=0,
            grid=grid,
            in_specs=[
                pl.BlockSpec((tm, tk), lambda i, k: (i, k)),        # L_hat tile
                pl.BlockSpec((tk, f_pad), lambda i, k: (k, 0)),     # x (reduce)
                pl.BlockSpec((tm, f_pad), lambda i, k: (i, 0)),     # x (rows)
                pl.BlockSpec((f_pad, h_pad), lambda i, k: (0, 0)),  # W10
                pl.BlockSpec((f_pad, h_pad), lambda i, k: (0, 0)),  # W11
                pl.BlockSpec((h_pad, c_pad), lambda i, k: (0, 0)),  # W21
                pl.BlockSpec((1, h_pad), lambda i, k: (0, 0)),      # b1
            ],
            out_specs=[
                pl.BlockSpec((tm, h_pad), lambda i, k: (i, 0)),     # h
                pl.BlockSpec((tm, c_pad), lambda i, k: (i, 0)),     # t1
            ],
            scratch_shapes=[pltpu.VMEM((tm, f_pad), jnp.float32)],
        ),
        compiler_params=cparams,
    )(l_p, x_p, x_p, w10, w11, w21, b1)

    # ---- layer 2: logits = h@W20 + L@t1 + b2 ; log_softmax ----
    out_p = pl.pallas_call(
        functools.partial(layer2_kernel, num_classes),
        out_shape=jax.ShapeDtypeStruct((n_pad, c_pad), jnp.float32),
        grid_spec=pltpu.PrefetchScalarGridSpec(
            num_scalar_prefetch=0,
            grid=grid,
            in_specs=[
                pl.BlockSpec((tm, tk), lambda i, k: (i, k)),        # L_hat tile
                pl.BlockSpec((tk, c_pad), lambda i, k: (k, 0)),     # t1 (reduce)
                pl.BlockSpec((tm, h_pad), lambda i, k: (i, 0)),     # h (rows)
                pl.BlockSpec((h_pad, c_pad), lambda i, k: (0, 0)),  # W20
                pl.BlockSpec((1, c_pad), lambda i, k: (0, 0)),      # b2
            ],
            out_specs=pl.BlockSpec((tm, c_pad), lambda i, k: (i, 0)),
            scratch_shapes=[pltpu.VMEM((tm, c_pad), jnp.float32)],
        ),
        compiler_params=cparams,
    )(l_p, t1_p, h_p, w20, b2)

    return out_p[:n, :num_classes]


# ----------------------------- JAX glue --------------------------------------


def build_scaled_laplacian(edge_index, num_nodes, lambda_max=2.0):
    """Dense L_hat = (2/lambda_max) * (I - D^-1/2 A D^-1/2) - I (PyG ChebConv)."""
    row, col = edge_index[0], edge_index[1]
    w = jnp.ones(row.shape[0], dtype=jnp.float32)
    adj = jnp.zeros((num_nodes, num_nodes), jnp.float32).at[row, col].add(w)
    adj = adj * (1.0 - jnp.eye(num_nodes, dtype=jnp.float32))  # no self loops
    deg = jnp.sum(adj, axis=1)
    d_inv_sqrt = jnp.where(deg > 0, 1.0 / jnp.sqrt(deg), 0.0)
    norm_adj = d_inv_sqrt[:, None] * adj * d_inv_sqrt[None, :]
    lap = jnp.eye(num_nodes, dtype=jnp.float32) - norm_adj
    return (2.0 / lambda_max) * lap - jnp.eye(num_nodes, dtype=jnp.float32)


def glorot(key, shape):
    fan_in, fan_out = shape
    limit = jnp.sqrt(6.0 / (fan_in + fan_out))
    return jax.random.uniform(key, shape, jnp.float32, -limit, limit)


def init_params(key, num_features, hidden, num_classes):
    k = jax.random.split(key, 4)
    return {
        "w10": glorot(k[0], (num_features, hidden)),
        "w11": glorot(k[1], (num_features, hidden)),
        "b1": jnp.zeros((1, hidden), jnp.float32),
        "w20": glorot(k[2], (hidden, num_classes)),
        "w21": glorot(k[3], (hidden, num_classes)),
        "b2": jnp.zeros((1, num_classes), jnp.float32),
    }


def chebnet_reference(l_hat, x, params):
    """Pure-JAX f32 reference for validation."""
    h = jnp.maximum(
        x @ params["w10"] + (l_hat @ x) @ params["w11"] + params["b1"], 0.0)
    logits = h @ params["w20"] + (l_hat @ h) @ params["w21"] + params["b2"]
    return jax.nn.log_softmax(logits, axis=1)


if __name__ == "__main__":
    NUM_NODES = 16
    NUM_FEATURES = 8
    HIDDEN = 32
    NUM_CLASSES = 6

    key = jax.random.PRNGKey(0)
    kx, ke, kp = jax.random.split(key, 3)

    x = jax.random.normal(kx, (NUM_NODES, NUM_FEATURES), jnp.float32)

    src = jax.random.randint(ke, (24,), 0, NUM_NODES)
    dst = (src + 1 + jax.random.randint(jax.random.fold_in(ke, 1), (24,), 0,
                                        NUM_NODES - 1)) % NUM_NODES
    edge_index = jnp.concatenate(
        [jnp.stack([src, dst]), jnp.stack([dst, src])], axis=1)   # (2, 48)

    l_hat = build_scaled_laplacian(edge_index, NUM_NODES)
    params = init_params(kp, NUM_FEATURES, HIDDEN, NUM_CLASSES)

    out = chebnet_forward(l_hat, x, params)
    out = jax.block_until_ready(out)

    # sanity: shape, rows are valid log-probs, close to f32 reference
    # (kernel uses bf16 MXU inputs with f32 accumulation -> loose tolerance).
    assert out.shape == (NUM_NODES, NUM_CLASSES)
    assert bool(jnp.allclose(jnp.sum(jnp.exp(out), axis=1), 1.0, atol=1e-3))
    ref = chebnet_reference(l_hat, x, params)
    max_err = float(jnp.max(jnp.abs(out - ref)))
    assert max_err < 1e-1, f"mismatch vs f32 reference: max_err={max_err}"
    assert bool(jnp.all(jnp.argmax(out, axis=1) == jnp.argmax(ref, axis=1)))

    print("KERNEL_OK")
</pallas_src>

<mosaic_0001>
module attributes {stable_mosaic.version = 11 : i64} {
  func.func @layer1_kernel(%arg0: i32, %arg1: i32, %arg2: memref<128x128xbf16, #tpu.memory_space<vmem>>, %arg3: memref<128x128xbf16, #tpu.memory_space<vmem>>, %arg4: memref<128x128xbf16, #tpu.memory_space<vmem>>, %arg5: memref<128x128xbf16, #tpu.memory_space<vmem>>, %arg6: memref<128x128xbf16, #tpu.memory_space<vmem>>, %arg7: memref<128x128xbf16, #tpu.memory_space<vmem>>, %arg8: memref<1x128xf32, #tpu.memory_space<vmem>>, %arg9: memref<128x128xbf16, #tpu.memory_space<vmem>>, %arg10: memref<128x128xbf16, #tpu.memory_space<vmem>>, %arg11: memref<128x128xf32, #tpu.memory_space<vmem>>) attributes {dimension_semantics = [#tpu.dimension_semantics<parallel>, #tpu.dimension_semantics<arbitrary>], iteration_bounds = array<i64: 1, 1>, scalar_prefetch = 0 : i64, scratch_operands = 1 : i64, tpu.core_type = #tpu.core_type<tc>, window_params = [{transform_indices = @transform_0, window_bounds = array<i64: 128, 128>}, {transform_indices = @transform_1, window_bounds = array<i64: 128, 128>}, {transform_indices = @transform_2, window_bounds = array<i64: 128, 128>}, {pipeline_mode = #tpu.pipeline_mode<synchronous>, transform_indices = @transform_3, window_bounds = array<i64: 128, 128>}, {pipeline_mode = #tpu.pipeline_mode<synchronous>, transform_indices = @transform_4, window_bounds = array<i64: 128, 128>}, {pipeline_mode = #tpu.pipeline_mode<synchronous>, transform_indices = @transform_5, window_bounds = array<i64: 128, 128>}, {pipeline_mode = #tpu.pipeline_mode<synchronous>, transform_indices = @transform_6, window_bounds = array<i64: 1, 128>}, {transform_indices = @transform_7, window_bounds = array<i64: 128, 128>}, {transform_indices = @transform_8, window_bounds = array<i64: 128, 128>}]} {
    %c0_i32 = arith.constant 0 : i32
    %0 = arith.cmpi eq, %arg1, %c0_i32 : i32
    %1 = arith.extui %0 : i1 to i32
    %c0_i32_0 = arith.constant 0 : i32
    %2 = arith.cmpi ne, %1, %c0_i32_0 : i32
    scf.if %2 {
      %cst_10 = arith.constant 0.000000e+00 : f32
      %12 = vector.broadcast %cst_10 : f32 to vector<128x128xf32>
      %c0_11 = arith.constant 0 : index
      %c0_12 = arith.constant 0 : index
      %13 = vector.load %arg11[%c0_11, %c0_12] : memref<128x128xf32, #tpu.memory_space<vmem>>, vector<128x128xf32>
      tpu.vector_store %arg11[%c0_11, %c0_12], %12 {strides = array<i32>} : memref<128x128xf32, #tpu.memory_space<vmem>>, vector<128x128xf32>,
    } else {
    }
    %c0 = arith.constant 0 : index
    %c0_1 = arith.constant 0 : index
    %3 = vector.load %arg11[%c0, %c0_1] : memref<128x128xf32, #tpu.memory_space<vmem>>, vector<128x128xf32>
    %c0_2 = arith.constant 0 : index
    %c0_3 = arith.constant 0 : index
    %4 = vector.load %arg2[%c0_2, %c0_3] : memref<128x128xbf16, #tpu.memory_space<vmem>>, vector<128x128xbf16>
    %c0_4 = arith.constant 0 : index
    %c0_5 = arith.constant 0 : index
    %5 = vector.load %arg3[%c0_4, %c0_5] : memref<128x128xbf16, #tpu.memory_space<vmem>>, vector<128x128xbf16>
    %cst = arith.constant dense<0.000000e+00> : vector<128x128xf32>
    %6 = tpu.matmul %4, %5, %cst {dimension_numbers = #tpu.dot_dimension_numbers<[1], [0], [0], [1], [0, 0, 1, 1], [], []>} : vector<128x128xbf16>, vector<128x128xbf16>, vector<128x128xf32> -> vector<128x128xf32>
    %7 = arith.addf %3, %6 : vector<128x128xf32>
    %c0_6 = arith.constant 0 : index
    %c0_7 = arith.constant 0 : index
    %8 = vector.load %arg11[%c0_6, %c0_7] : memref<128x128xf32, #tpu.memory_space<vmem>>, vector<128x128xf32>
    tpu.vector_store %arg11[%c0_6, %c0_7], %7 {strides = array<i32>} : memref<128x128xf32, #tpu.memory_space<vmem>>, vector<128x128xf32>,
    %c0_i32_8 = arith.constant 0 : i32
    %9 = arith.cmpi eq, %arg1, %c0_i32_8 : i32
    %10 = arith.extui %9 : i1 to i32
    %c0_i32_9 = arith.constant 0 : i32
    %11 = arith.cmpi ne, %10, %c0_i32_9 : i32
    scf.if %11 {
      %c0_10 = arith.constant 0 : index
      %c0_11 = arith.constant 0 : index
      %12 = vector.load %arg4[%c0_10, %c0_11] : memref<128x128xbf16, #tpu.memory_space<vmem>>, vector<128x128xbf16>
      %c0_12 = arith.constant 0 : index
      %c0_13 = arith.constant 0 : index
      %13 = vector.load %arg5[%c0_12, %c0_13] : memref<128x128xbf16, #tpu.memory_space<vmem>>, vector<128x128xbf16>
      %cst_14 = arith.constant dense<0.000000e+00> : vector<128x128xf32>
      %14 = tpu.matmul %12, %13, %cst_14 {dimension_numbers = #tpu.dot_dimension_numbers<[1], [0], [0], [1], [0, 0, 1, 1], [], []>} : vector<128x128xbf16>, vector<128x128xbf16>, vector<128x128xf32> -> vector<128x128xf32>
      %c0_15 = arith.constant 0 : index
      %c0_16 = arith.constant 0 : index
      %15 = vector.load %arg11[%c0_15, %c0_16] : memref<128x128xf32, #tpu.memory_space<vmem>>, vector<128x128xf32>
      %16 = arith.truncf %15 : vector<128x128xf32> to vector<128x128xbf16>
      %c0_17 = arith.constant 0 : index
      %c0_18 = arith.constant 0 : index
      %17 = vector.load %arg6[%c0_17, %c0_18] : memref<128x128xbf16, #tpu.memory_space<vmem>>, vector<128x128xbf16>
      %cst_19 = arith.constant dense<0.000000e+00> : vector<128x128xf32>
      %18 = tpu.matmul %16, %17, %cst_19 {dimension_numbers = #tpu.dot_dimension_numbers<[1], [0], [0], [1], [0, 0, 1, 1], [], []>} : vector<128x128xbf16>, vector<128x128xbf16>, vector<128x128xf32> -> vector<128x128xf32>
      %19 = arith.addf %14, %18 : vector<128x128xf32>
      %c0_20 = arith.constant 0 : index
      %c0_21 = arith.constant 0 : index
      %20 = vector.load %arg8[%c0_20, %c0_21] : memref<1x128xf32, #tpu.memory_space<vmem>>, vector<1x128xf32>
      %21 = vector.broadcast %20 : vector<1x128xf32> to vector<128x128xf32>
      %22 = arith.addf %19, %21 : vector<128x128xf32>
      %cst_22 = arith.constant 0.000000e+00 : f32
      %23 = vector.broadcast %cst_22 : f32 to vector<128x128xf32>
      %24 = arith.maximumf %22, %23 : vector<128x128xf32>
      %25 = arith.truncf %24 : vector<128x128xf32> to vector<128x128xbf16>
      %c0_23 = arith.constant 0 : index
      %c0_24 = arith.constant 0 : index
      %26 = vector.load %arg9[%c0_23, %c0_24] : memref<128x128xbf16, #tpu.memory_space<vmem>>, vector<128x128xbf16>
      tpu.vector_store %arg9[%c0_23, %c0_24], %25 {strides = array<i32>} : memref<128x128xbf16, #tpu.memory_space<vmem>>, vector<128x128xbf16>,
      %c0_25 = arith.constant 0 : index
      %c0_26 = arith.constant 0 : index
      %27 = vector.load %arg7[%c0_25, %c0_26] : memref<128x128xbf16, #tpu.memory_space<vmem>>, vector<128x128xbf16>
      %cst_27 = arith.constant dense<0.000000e+00> : vector<128x128xf32>
      %28 = tpu.matmul %25, %27, %cst_27 {dimension_numbers = #tpu.dot_dimension_numbers<[1], [0], [0], [1], [0, 0, 1, 1], [], []>} : vector<128x128xbf16>, vector<128x128xbf16>, vector<128x128xf32> -> vector<128x128xf32>
      %29 = arith.truncf %28 : vector<128x128xf32> to vector<128x128xbf16>
      %c0_28 = arith.constant 0 : index
      %c0_29 = arith.constant 0 : index
      %30 = vector.load %arg10[%c0_28, %c0_29] : memref<128x128xbf16, #tpu.memory_space<vmem>>, vector<128x128xbf16>
      tpu.vector_store %arg10[%c0_28, %c0_29], %29 {strides = array<i32>} : memref<128x128xbf16, #tpu.memory_space<vmem>>, vector<128x128xbf16>,
    } else {
    }
    return
  }
  func.func @transform_0(%arg0: i32, %arg1: i32) -> (i32, i32) {
    %c0_i32 = arith.constant 0 : i32
    return %arg0, %arg1 : i32, i32
  }
  func.func @transform_1(%arg0: i32, %arg1: i32) -> (i32, i32) {
    %c0_i32 = arith.constant 0 : i32
    %c0_i32_0 = arith.constant 0 : i32
    return %arg1, %c0_i32 : i32, i32
  }
  func.func @transform_2(%arg0: i32, %arg1: i32) -> (i32, i32) {
    %c0_i32 = arith.constant 0 : i32
    %c0_i32_0 = arith.constant 0 : i32
    return %arg0, %c0_i32 : i32, i32
  }
  func.func @transform_3(%arg0: i32, %arg1: i32) -> (i32, i32) {
    %c0_i32 = arith.constant 0 : i32
    %c0_i32_0 = arith.constant 0 : i32
    %c0_i32_1 = arith.constant 0 : i32
    return %c0_i32, %c0_i32_0 : i32, i32
  }
  func.func @transform_4(%arg0: i32, %arg1: i32) -> (i32, i32) {
    %c0_i32 = arith.constant 0 : i32
    %c0_i32_0 = arith.constant 0 : i32
    %c0_i32_1 = arith.constant 0 : i32
    return %c0_i32, %c0_i32_0 : i32, i32
  }
  func.func @transform_5(%arg0: i32, %arg1: i32) -> (i32, i32) {
    %c0_i32 = arith.constant 0 : i32
    %c0_i32_0 = arith.constant 0 : i32
    %c0_i32_1 = arith.constant 0 : i32
    return %c0_i32, %c0_i32_0 : i32, i32
  }
  func.func @transform_6(%arg0: i32, %arg1: i32) -> (i32, i32) {
    %c0_i32 = arith.constant 0 : i32
    %c0_i32_0 = arith.constant 0 : i32
    %c0_i32_1 = arith.constant 0 : i32
    return %c0_i32, %c0_i32_0 : i32, i32
  }
  func.func @transform_7(%arg0: i32, %arg1: i32) -> (i32, i32) {
    %c0_i32 = arith.constant 0 : i32
    %c0_i32_0 = arith.constant 0 : i32
    return %arg0, %c0_i32 : i32, i32
  }
  func.func @transform_8(%arg0: i32, %arg1: i32) -> (i32, i32) {
    %c0_i32 = arith.constant 0 : i32
    %c0_i32_0 = arith.constant 0 : i32
    return %arg0, %c0_i32 : i32, i32
  }
}

</mosaic_0001>

<llo_original>
// kernel: tpu_custom_call.1
$region0: #{tpu_custom_call.1}
  #allocation0 [shape = 'u32[]', space=smem, size = 0x4, offset = 0x4, fixed_abs, tag = 'smem constant byte address 0x4 - core index']
  #allocation1 [shape = 'u32[144,128]{1,0:T(1,128)}', space=vmem, size = 0x12000, scoped, tag = 'internal scratch']
  #allocation2 [shape = 'f32[128,128]{1,0:T(8,128)}', space=vmem, size = 0x10000, scoped, tag = 'scratch operand']
  %s0 = inlined_call_operand.hbm [shape: bf16[128,128], index: 0, kind: input, shape index: {}]
  %s1 = inlined_call_operand.hbm [shape: bf16[128,128], index: 1, kind: input, shape index: {}]
  %s2 = inlined_call_operand.hbm [shape: bf16[128,128], index: 2, kind: input, shape index: {}]
  %s3 = inlined_call_operand.hbm [shape: bf16[128,128], index: 3, kind: input, shape index: {}]
  %s4 = inlined_call_operand.hbm [shape: bf16[128,128], index: 4, kind: input, shape index: {}]
  %s5 = inlined_call_operand.hbm [shape: bf16[128,128], index: 5, kind: input, shape index: {}]
  %s6 = inlined_call_operand.vmem [shape: f32[1,128], index: 6, kind: input, shape index: {}]
  %s7 = inlined_call_operand.hbm [shape: bf16[128,128], index: 7, kind: output, shape index: {0}]
  %s8 = inlined_call_operand.hbm [shape: bf16[128,128], index: 8, kind: output, shape index: {1}]
  %9 = xla_tuple %s7, %s8
  %s10 = sld [smem:[#allocation0]]
  $region78: #{tpu_custom_call.1} parent=0
    _
  %s12 = ssub.s32 1, %s10
  %s13 = scalar_select 0, %s12, %s10
  $region1: #{tpu_custom_call.1} parent=0
    #allocation3 [shape = 'u8[32768]{0}', space=vmem, size = 0x8000, scoped, tag = 'input window, operand 0, single buffered']
    #allocation4 [shape = 's32[1]{0}', space=sflag, size = 0x4, scoped, tag = 'scoped memory for tpu_custom_call.1']
    #allocation5 [shape = 's32[1]{0}', space=sflag, size = 0x4, scoped, tag = 'scoped memory for tpu_custom_call.1']
    #allocation6 [shape = 'u8[32768]{0}', space=vmem, size = 0x8000, scoped, tag = 'input window, operand 1, single buffered']
    #allocation7 [shape = 's32[1]{0}', space=sflag, size = 0x4, scoped, tag = 'scoped memory for tpu_custom_call.1']
    #allocation8 [shape = 'u8[32768]{0}', space=vmem, size = 0x8000, scoped, tag = 'input window, operand 2, single buffered']
    #allocation9 [shape = 'u8[32768]{0}', space=vmem, size = 0x8000, scoped, tag = 'input window, operand 3, single buffered']
    #allocation10 [shape = 's32[1]{0}', space=sflag, size = 0x4, scoped, tag = 'scoped memory for tpu_custom_call.1']
    #allocation11 [shape = 'u8[32768]{0}', space=vmem, size = 0x8000, scoped, tag = 'input window, operand 4, single buffered']
    #allocation12 [shape = 'u8[32768]{0}', space=vmem, size = 0x8000, scoped, tag = 'input window, operand 5, single buffered']
    #allocation13 [shape = 's32[1]{0}', space=sflag, size = 0x4, scoped, tag = 'scoped memory for tpu_custom_call.1']
    #allocation14 [shape = 'u8[32768]{0}', space=vmem, size = 0x8000, scoped, tag = 'output window, operand 0, single buffered']
    #allocation15 [shape = 'u8[32768]{0}', space=vmem, size = 0x8000, scoped, tag = 'output window, operand 1, single buffered']
    #allocation16 [shape = 's32[1]{0}', space=sflag, size = 0x4, scoped, tag = 'scoped memory for tpu_custom_call.1']
    %14 = vsyncpa [#allocation4], 0
    %15 = vsyncpa [#allocation7], 0
    %16 = vsyncpa [#allocation10], 0
    %17 = vsyncpa [#allocation13], 0
    %18 = vsyncpa [#allocation5], 0
    %19 = vsyncpa [#allocation16], 0
    // Predicated region
    $region2: #{tpu_custom_call.1} parent=1 // pred_check
      _
    $region3: #{tpu_custom_call.1} parent=1 // pred_check_branch
      %21 = sbr.rel (0) target = $region5
    $region4: #{tpu_custom_call.1} parent=1 // pred_region
      %s23 = ssub.s32 1024, 1024
      %24 = vsyncadd [#allocation4], %s23
      %s25 = sshll.u32 [#allocation3], 4
      %s26 = int_to_ptr.vmem [resolvable:$true] %s25
      %31 = dma.hbm_to_vmem [thread:$0]  %s0, 1024, %s26, [#allocation4], 64, 64, 4
    $region5: #{tpu_custom_call.1} parent=1 // pred_fallthru
      _
    // Predicated region
    $region6: #{tpu_custom_call.1} parent=1 // pred_check
      _
    $region7: #{tpu_custom_call.1} parent=1 // pred_check_branch
      %33 = sbr.rel (0) target = $region9
    $region8: #{tpu_custom_call.1} parent=1 // pred_region
      %s35 = ssub.s32 1024, 1024
      %36 = vsyncadd [#allocation7], %s35
      %s37 = sshll.u32 [#allocation6], 4
      %s38 = int_to_ptr.vmem [resolvable:$true] %s37
      %43 = dma.hbm_to_vmem [thread:$0]  %s1, 1024, %s38, [#allocation7], 64, 64, 4
    $region9: #{tpu_custom_call.1} parent=1 // pred_fallthru
      _
    // Predicated region
    $region10: #{tpu_custom_call.1} parent=1 // pred_check
      _
    $region11: #{tpu_custom_call.1} parent=1 // pred_check_branch
      %45 = sbr.rel (0) target = $region13
    $region12: #{tpu_custom_call.1} parent=1 // pred_region
      %s47 = ssub.s32 1024, 1024
      %48 = vsyncadd [#allocation7], %s47
      %s49 = sshll.u32 [#allocation8], 4
      %s50 = int_to_ptr.vmem [resolvable:$true] %s49
      %55 = dma.hbm_to_vmem [thread:$0]  %s2, 1024, %s50, [#allocation7], 64, 64, 4
    $region13: #{tpu_custom_call.1} parent=1 // pred_fallthru
      _
    // Predicated region
    $region14: #{tpu_custom_call.1} parent=1 // pred_check
      _
    $region15: #{tpu_custom_call.1} parent=1 // pred_check_branch
      %57 = sbr.rel (0) target = $region17
    $region16: #{tpu_custom_call.1} parent=1 // pred_region
      %s59 = ssub.s32 1024, 1024
      %60 = vsyncadd [#allocation10], %s59
      %s61 = sshll.u32 [#allocation9], 4
      %s62 = int_to_ptr.vmem [resolvable:$true] %s61
      %67 = dma.hbm_to_vmem [thread:$0]  %s3, 1024, %s62, [#allocation10], 64, 64, 4
    $region17: #{tpu_custom_call.1} parent=1 // pred_fallthru
      _
    // Predicated region
    $region18: #{tpu_custom_call.1} parent=1 // pred_check
      _
    $region19: #{tpu_custom_call.1} parent=1 // pred_check_branch
      %69 = sbr.rel (0) target = $region21
    $region20: #{tpu_custom_call.1} parent=1 // pred_region
      %s71 = ssub.s32 1024, 1024
      %72 = vsyncadd [#allocation10], %s71
      %s73 = sshll.u32 [#allocation11], 4
      %s74 = int_to_ptr.vmem [resolvable:$true] %s73
      %79 = dma.hbm_to_vmem [thread:$0]  %s4, 1024, %s74, [#allocation10], 64, 64, 4
    $region21: #{tpu_custom_call.1} parent=1 // pred_fallthru
      _
    // Predicated region
    $region22: #{tpu_custom_call.1} parent=1 // pred_check
      _
    $region23: #{tpu_custom_call.1} parent=1 // pred_check_branch
      %81 = sbr.rel (0) target = $region25
    $region24: #{tpu_custom_call.1} parent=1 // pred_region
      %s83 = ssub.s32 1024, 1024
      %84 = vsyncadd [#allocation13], %s83
      %s85 = sshll.u32 [#allocation12], 4
      %s86 = int_to_ptr.vmem [resolvable:$true] %s85
      %91 = dma.hbm_to_vmem [thread:$0]  %s5, 1024, %s86, [#allocation13], 64, 64, 4
    $region25: #{tpu_custom_call.1} parent=1 // pred_fallthru
      _
    // Predicated region
    $region26: #{tpu_custom_call.1} parent=1 // pred_check
      _
    $region27: #{tpu_custom_call.1} parent=1 // pred_check_branch
      %93 = sbr.rel (0) target = $region29
    $region28: #{tpu_custom_call.1} parent=1 // pred_region
      _
    $region29: #{tpu_custom_call.1} parent=1 // pred_fallthru
      _
    // Predicated region
    $region30: #{tpu_custom_call.1} parent=1 // pred_check
      _
    $region31: #{tpu_custom_call.1} parent=1 // pred_check_branch
      %95 = sbr.rel (0) target = $region33
    $region32: #{tpu_custom_call.1} parent=1 // pred_region
      %96 = dma.done [#allocation4], 1024
    $region33: #{tpu_custom_call.1} parent=1 // pred_fallthru
      _
    // Predicated region
    $region34: #{tpu_custom_call.1} parent=1 // pred_check
      _
    $region35: #{tpu_custom_call.1} parent=1 // pred_check_branch
      %98 = sbr.rel (0) target = $region37
    $region36: #{tpu_custom_call.1} parent=1 // pred_region
      %99 = dma.done [#allocation7], 1024
    $region37: #{tpu_custom_call.1} parent=1 // pred_fallthru
      _
    // Predicated region
    $region38: #{tpu_custom_call.1} parent=1 // pred_check
      _
    $region39: #{tpu_custom_call.1} parent=1 // pred_check_branch
      %101 = sbr.rel (0) target = $region41
    $region40: #{tpu_custom_call.1} parent=1 // pred_region
      %102 = dma.done [#allocation7], 1024
    $region41: #{tpu_custom_call.1} parent=1 // pred_fallthru
      _
    // Predicated region
    $region42: #{tpu_custom_call.1} parent=1 // pred_check
      _
    $region43: #{tpu_custom_call.1} parent=1 // pred_check_branch
      %104 = sbr.rel (0) target = $region45
    $region44: #{tpu_custom_call.1} parent=1 // pred_region
      %105 = dma.done [#allocation10], 1024
    $region45: #{tpu_custom_call.1} parent=1 // pred_fallthru
      _
    // Predicated region
    $region46: #{tpu_custom_call.1} parent=1 // pred_check
      _
    $region47: #{tpu_custom_call.1} parent=1 // pred_check_branch
      %107 = sbr.rel (0) target = $region49
    $region48: #{tpu_custom_call.1} parent=1 // pred_region
      %108 = dma.done [#allocation10], 1024
    $region49: #{tpu_custom_call.1} parent=1 // pred_fallthru
      _
    // Predicated region
    $region50: #{tpu_custom_call.1} parent=1 // pred_check
      _
    $region51: #{tpu_custom_call.1} parent=1 // pred_check_branch
      %110 = sbr.rel (0) target = $region53
    $region52: #{tpu_custom_call.1} parent=1 // pred_region
      %111 = dma.done [#allocation13], 1024
    $region53: #{tpu_custom_call.1} parent=1 // pred_fallthru
      _
    %p113 = scmp.eq.s32.totalorder 0, 0
    // Predicated region
    $region54: #{tpu_custom_call.1} parent=1 // pred_check
      %p114 = pneg %p113
    $region55: #{tpu_custom_call.1} parent=1 // pred_check_branch
      %116 = sbr.rel (%p114) target = $region57
    $region56: #{tpu_custom_call.1} parent=1 // pred_region
      %117 = vst [vmem:[#allocation2] sm:$0xff] 0.0
      %118 = vst [vmem:[#allocation2 + $0x8] sm:$0xff] 0.0
      %119 = vst [vmem:[#allocation2 + $0x10] sm:$0xff] 0.0
      %120 = vst [vmem:[#allocation2 + $0x18] sm:$0xff] 0.0
      %121 = vst [vmem:[#allocation2 + $0x20] sm:$0xff] 0.0
      %122 = vst [vmem:[#allocation2 + $0x28] sm:$0xff] 0.0
      %123 = vst [vmem:[#allocation2 + $0x30] sm:$0xff] 0.0
      %124 = vst [vmem:[#allocation2 + $0x38] sm:$0xff] 0.0
      %125 = vst [vmem:[#allocation2 + $0x40] sm:$0xff] 0.0
      %126 = vst [vmem:[#allocation2 + $0x48] sm:$0xff] 0.0
      %127 = vst [vmem:[#allocation2 + $0x50] sm:$0xff] 0.0
      %128 = vst [vmem:[#allocation2 + $0x58] sm:$0xff] 0.0
      %129 = vst [vmem:[#allocation2 + $0x60] sm:$0xff] 0.0
      %130 = vst [vmem:[#allocation2 + $0x68] sm:$0xff] 0.0
      %131 = vst [vmem:[#allocation2 + $0x70] sm:$0xff] 0.0
      %132 = vst [vmem:[#allocation2 + $0x78] sm:$0xff] 0.0
    $region57: #{tpu_custom_call.1} parent=1 // pred_fallthru
      _
    %v133 = vld [vmem:[#allocation2] sm:$0xff]
    %v134 = vld [vmem:[#allocation2 + $0x8] sm:$0xff]
    %v135 = vld [vmem:[#allocation2 + $0x10] sm:$0xff]
    %v136 = vld [vmem:[#allocation2 + $0x18] sm:$0xff]
    %v137 = vld [vmem:[#allocation2 + $0x20] sm:$0xff]
    %v138 = vld [vmem:[#allocation2 + $0x28] sm:$0xff]
    %v139 = vld [vmem:[#allocation2 + $0x30] sm:$0xff]
    %v140 = vld [vmem:[#allocation2 + $0x38] sm:$0xff]
    %v141 = vld [vmem:[#allocation2 + $0x40] sm:$0xff]
    %v142 = vld [vmem:[#allocation2 + $0x48] sm:$0xff]
    %v143 = vld [vmem:[#allocation2 + $0x50] sm:$0xff]
    %v144 = vld [vmem:[#allocation2 + $0x58] sm:$0xff]
    %v145 = vld [vmem:[#allocation2 + $0x60] sm:$0xff]
    %v146 = vld [vmem:[#allocation2 + $0x68] sm:$0xff]
    %v147 = vld [vmem:[#allocation2 + $0x70] sm:$0xff]
    %v148 = vld [vmem:[#allocation2 + $0x78] sm:$0xff]
    %v149 = vld [vmem:[#allocation3] sm:$0xf]
    %v150 = vld [vmem:[#allocation3 + $0x4] sm:$0xf]
    %v151 = vld [vmem:[#allocation3 + $0x8] sm:$0xf]
    %v152 = vld [vmem:[#allocation3 + $0xc] sm:$0xf]
    %v153 = vld [vmem:[#allocation3 + $0x10] sm:$0xf]
    %v154 = vld [vmem:[#allocation3 + $0x14] sm:$0xf]
    %v155 = vld [vmem:[#allocation3 + $0x18] sm:$0xf]
    %v156 = vld [vmem:[#allocation3 + $0x1c] sm:$0xf]
    %v157 = vld [vmem:[#allocation3 + $0x20] sm:$0xf]
    %v158 = vld [vmem:[#allocation3 + $0x24] sm:$0xf]
    %v159 = vld [vmem:[#allocation3 + $0x28] sm:$0xf]
    %v160 = vld [vmem:[#allocation3 + $0x2c] sm:$0xf]
    %v161 = vld [vmem:[#allocation3 + $0x30] sm:$0xf]
    %v162 = vld [vmem:[#allocation3 + $0x34] sm:$0xf]
    %v163 = vld [vmem:[#allocation3 + $0x38] sm:$0xf]
    %v164 = vld [vmem:[#allocation3 + $0x3c] sm:$0xf]
    %v165 = vld [vmem:[#allocation6] sm:$0xf]
    %v166 = vld [vmem:[#allocation6 + $0x4] sm:$0xf]
    %v167 = vld [vmem:[#allocation6 + $0x8] sm:$0xf]
    %v168 = vld [vmem:[#allocation6 + $0xc] sm:$0xf]
    %v169 = vld [vmem:[#allocation6 + $0x10] sm:$0xf]
    %v170 = vld [vmem:[#allocation6 + $0x14] sm:$0xf]
    %v171 = vld [vmem:[#allocation6 + $0x18] sm:$0xf]
    %v172 = vld [vmem:[#allocation6 + $0x1c] sm:$0xf]
    %v173 = vld [vmem:[#allocation6 + $0x20] sm:$0xf]
    %v174 = vld [vmem:[#allocation6 + $0x24] sm:$0xf]
    %v175 = vld [vmem:[#allocation6 + $0x28] sm:$0xf]
    %v176 = vld [vmem:[#allocation6 + $0x2c] sm:$0xf]
    %v177 = vld [vmem:[#allocation6 + $0x30] sm:$0xf]
    %v178 = vld [vmem:[#allocation6 + $0x34] sm:$0xf]
    %v179 = vld [vmem:[#allocation6 + $0x38] sm:$0xf]
    %v180 = vld [vmem:[#allocation6 + $0x3c] sm:$0xf]
    %v197 = vunpack.c.l.b16 %v149
    %v198 = vunpack.c.l.b16 %v150
    %v199 = vunpack.c.l.b16 %v151
    %v200 = vunpack.c.l.b16 %v152
    %v201 = vunpack.c.l.b16 %v153
    %v202 = vunpack.c.l.b16 %v154
    %v203 = vunpack.c.l.b16 %v155
    %v204 = vunpack.c.l.b16 %v156
    %v205 = vunpack.c.l.b16 %v157
    %v206 = vunpack.c.l.b16 %v158
    %v207 = vunpack.c.l.b16 %v159
    %v208 = vunpack.c.l.b16 %v160
    %v209 = vunpack.c.l.b16 %v161
    %v210 = vunpack.c.l.b16 %v162
    %v211 = vunpack.c.l.b16 %v163
    %v212 = vunpack.c.l.b16 %v164
    %v213 = vpack.c.b16 %v198, %v197
    %v214 = vpack.c.b16 %v200, %v199
    %v215 = vpack.c.b16 %v202, %v201
    %v216 = vpack.c.b16 %v204, %v203
    %v217 = vpack.c.b16 %v206, %v205
    %v218 = vpack.c.b16 %v208, %v207
    %v219 = vpack.c.b16 %v210, %v209
    %v220 = vpack.c.b16 %v212, %v211
    %v245 = vunpack.c.l.b16 %v165
    %v246 = vunpack.c.l.b16 %v166
    %v247 = vunpack.c.l.b16 %v167
    %v248 = vunpack.c.l.b16 %v168
    %v249 = vunpack.c.l.b16 %v169
    %v250 = vunpack.c.l.b16 %v170
    %v251 = vunpack.c.l.b16 %v171
    %v252 = vunpack.c.l.b16 %v172
    %v253 = vunpack.c.l.b16 %v173
    %v254 = vunpack.c.l.b16 %v174
    %v255 = vunpack.c.l.b16 %v175
    %v256 = vunpack.c.l.b16 %v176
    %v257 = vunpack.c.l.b16 %v177
    %v258 = vunpack.c.l.b16 %v178
    %v259 = vunpack.c.l.b16 %v179
    %v260 = vunpack.c.l.b16 %v180
    %v261 = vpack.c.b16 %v246, %v245
    %v262 = vpack.c.b16 %v248, %v247
    %v263 = vpack.c.b16 %v250, %v249
    %v264 = vpack.c.b16 %v252, %v251
    %v265 = vpack.c.b16 %v254, %v253
    %v266 = vpack.c.b16 %v256, %v255
    %v267 = vpack.c.b16 %v258, %v257
    %v268 = vpack.c.b16 %v260, %v259
    %277 = vmatprep.subr.bf16.mxu0 0
    %278 = vmatpush1.bf16.msra.mxu0 %v261
    %279 = vmatprep.subr.bf16.mxu0 0
    %280 = vmatpush1.bf16.msra.mxu0 %v262
    %281 = vmatprep.subr.bf16.mxu0 0
    %282 = vmatpush1.bf16.msra.mxu0 %v263
    %283 = vmatprep.subr.bf16.mxu0 0
    %284 = vmatpush1.bf16.msra.mxu0 %v264
    %285 = vmatprep.subr.bf16.mxu0 0
    %286 = vmatpush1.bf16.msra.mxu0 %v265
    %287 = vmatprep.subr.bf16.mxu0 0
    %288 = vmatpush1.bf16.msra.mxu0 %v266
    %289 = vmatprep.subr.bf16.mxu0 0
    %290 = vmatpush1.bf16.msra.mxu0 %v267
    %291 = vmatprep.subr.bf16.mxu0 0
    %292 = vmatpush1.bf16.msra.mxu0 %v268
    %293 = vmatprep.subr.bf16.mxu0 0
    %294 = vmatpush1.bf16.msra.mxu0 0
    %295 = vmatprep.subr.bf16.mxu0 0
    %296 = vmatpush1.bf16.msra.mxu0 0
    %297 = vmatprep.subr.bf16.mxu0 0
    %298 = vmatpush1.bf16.msra.mxu0 0
    %299 = vmatprep.subr.bf16.mxu0 0
    %300 = vmatpush1.bf16.msra.mxu0 0
    %301 = vmatprep.subr.bf16.mxu0 0
    %302 = vmatpush1.bf16.msra.mxu0 0
    %303 = vmatprep.subr.bf16.mxu0 0
    %304 = vmatpush1.bf16.msra.mxu0 0
    %305 = vmatprep.subr.bf16.mxu0 0
    %306 = vmatpush1.bf16.msra.mxu0 0
    %307 = vmatprep.subr.bf16.mxu0 0
    %308 = vmatpush1.bf16.msra.mxu0 0
    %309 = vmatprep.mubr.bf16.mxu0 0
    %310 = vmatmul.mubr.bf16.gmra.mrb[0].mxu0 %v213
    %v311 = vpop.f32.mrb[0].mxu0
    %v312 = vadd.f32 0.0, %v311
    %v313 = vpop.f32.mrb[0].mxu0
    %v314 = vpop.f32.mrb[0].mxu0
    %v315 = vadd.f32 0.0, %v314
    %v316 = vpop.f32.mrb[0].mxu0
    %317 = vmatprep.mubr.bf16.mxu0 0
    %318 = vmatmul.mubr.bf16.gmra.mrb[0].mxu0 %v214
    %v319 = vpop.f32.mrb[0].mxu0
    %v320 = vadd.f32 0.0, %v319
    %v321 = vpop.f32.mrb[0].mxu0
    %v322 = vpop.f32.mrb[0].mxu0
    %v323 = vadd.f32 0.0, %v322
    %v324 = vpop.f32.mrb[0].mxu0
    %325 = vmatprep.mubr.bf16.mxu0 0
    %326 = vmatmul.mubr.bf16.gmra.mrb[0].mxu0 %v215
    %v327 = vpop.f32.mrb[0].mxu0
    %v328 = vadd.f32 0.0, %v327
    %v329 = vpop.f32.mrb[0].mxu0
    %v330 = vpop.f32.mrb[0].mxu0
    %v331 = vadd.f32 0.0, %v330
    %v332 = vpop.f32.mrb[0].mxu0
    %333 = vmatprep.mubr.bf16.mxu0 0
    %334 = vmatmul.mubr.bf16.gmra.mrb[0].mxu0 %v216
    %v335 = vpop.f32.mrb[0].mxu0
    %v336 = vadd.f32 0.0, %v335
    %v337 = vpop.f32.mrb[0].mxu0
    %v338 = vpop.f32.mrb[0].mxu0
    %v339 = vadd.f32 0.0, %v338
    %v340 = vpop.f32.mrb[0].mxu0
    %341 = vmatprep.mubr.bf16.mxu0 0
    %342 = vmatmul.mubr.bf16.gmra.mrb[0].mxu0 %v217
    %v343 = vpop.f32.mrb[0].mxu0
    %v344 = vadd.f32 0.0, %v343
    %v345 = vpop.f32.mrb[0].mxu0
    %v346 = vpop.f32.mrb[0].mxu0
    %v347 = vadd.f32 0.0, %v346
    %v348 = vpop.f32.mrb[0].mxu0
    %349 = vmatprep.mubr.bf16.mxu0 0
    %350 = vmatmul.mubr.bf16.gmra.mrb[0].mxu0 %v218
    %v351 = vpop.f32.mrb[0].mxu0
    %v352 = vadd.f32 0.0, %v351
    %v353 = vpop.f32.mrb[0].mxu0
    %v354 = vpop.f32.mrb[0].mxu0
    %v355 = vadd.f32 0.0, %v354
    %v356 = vpop.f32.mrb[0].mxu0
    %357 = vmatprep.mubr.bf16.mxu0 0
    %358 = vmatmul.mubr.bf16.gmra.mrb[0].mxu0 %v219
    %v359 = vpop.f32.mrb[0].mxu0
    %v360 = vadd.f32 0.0, %v359
    %v361 = vpop.f32.mrb[0].mxu0
    %v362 = vpop.f32.mrb[0].mxu0
    %v363 = vadd.f32 0.0, %v362
    %v364 = vpop.f32.mrb[0].mxu0
    %365 = vmatprep.mubr.bf16.mxu0 0
    %366 = vmatmul.mubr.bf16.gmra.mrb[0].mxu0 %v220
    %v367 = vpop.f32.mrb[0].mxu0
    %v368 = vadd.f32 0.0, %v367
    %v369 = vpop.f32.mrb[0].mxu0
    %v370 = vpop.f32.mrb[0].mxu0
    %v371 = vadd.f32 0.0, %v370
    %v372 = vpop.f32.mrb[0].mxu0
    %373 = vdwg.mxu0
    %v374 = vadd.f32 %v133, %v312
    %v375 = vadd.f32 %v134, %v315
    %v376 = vadd.f32 %v135, %v320
    %v377 = vadd.f32 %v136, %v323
    %v378 = vadd.f32 %v137, %v328
    %v379 = vadd.f32 %v138, %v331
    %v380 = vadd.f32 %v139, %v336
    %v381 = vadd.f32 %v140, %v339
    %v382 = vadd.f32 %v141, %v344
    %v383 = vadd.f32 %v142, %v347
    %v384 = vadd.f32 %v143, %v352
    %v385 = vadd.f32 %v144, %v355
    %v386 = vadd.f32 %v145, %v360
    %v387 = vadd.f32 %v146, %v363
    %v388 = vadd.f32 %v147, %v368
    %v389 = vadd.f32 %v148, %v371
    %390 = vst [vmem:[#allocation2] sm:$0xff] %v374
    %391 = vst [vmem:[#allocation2 + $0x8] sm:$0xff] %v375
    %392 = vst [vmem:[#allocation2 + $0x10] sm:$0xff] %v376
    %393 = vst [vmem:[#allocation2 + $0x18] sm:$0xff] %v377
    %394 = vst [vmem:[#allocation2 + $0x20] sm:$0xff] %v378
    %395 = vst [vmem:[#allocation2 + $0x28] sm:$0xff] %v379
    %396 = vst [vmem:[#allocation2 + $0x30] sm:$0xff] %v380
    %397 = vst [vmem:[#allocation2 + $0x38] sm:$0xff] %v381
    %398 = vst [vmem:[#allocation2 + $0x40] sm:$0xff] %v382
    %399 = vst [vmem:[#allocation2 + $0x48] sm:$0xff] %v383
    %400 = vst [vmem:[#allocation2 + $0x50] sm:$0xff] %v384
    %401 = vst [vmem:[#allocation2 + $0x58] sm:$0xff] %v385
    %402 = vst [vmem:[#allocation2 + $0x60] sm:$0xff] %v386
    %403 = vst [vmem:[#allocation2 + $0x68] sm:$0xff] %v387
    %404 = vst [vmem:[#allocation2 + $0x70] sm:$0xff] %v388
    %405 = vst [vmem:[#allocation2 + $0x78] sm:$0xff] %v389
    // Predicated region
    $region58: #{tpu_custom_call.1} parent=1 // pred_check
      %p406 = pneg %p113
    $region59: #{tpu_custom_call.1} parent=1 // pred_check_branch
      %408 = sbr.rel (%p406) target = $region61
    $region60: #{tpu_custom_call.1} parent=1 // pred_region
      %v409 = vld [vmem:[#allocation8] sm:$0xf]
      %v410 = vld [vmem:[#allocation8 + $0x4] sm:$0xf]
      %v411 = vld [vmem:[#allocation8 + $0x8] sm:$0xf]
      %v412 = vld [vmem:[#allocation8 + $0xc] sm:$0xf]
      %v413 = vld [vmem:[#allocation8 + $0x10] sm:$0xf]
      %v414 = vld [vmem:[#allocation8 + $0x14] sm:$0xf]
      %v415 = vld [vmem:[#allocation8 + $0x18] sm:$0xf]
      %v416 = vld [vmem:[#allocation8 + $0x1c] sm:$0xf]
      %v417 = vld [vmem:[#allocation8 + $0x20] sm:$0xf]
      %v418 = vld [vmem:[#allocation8 + $0x24] sm:$0xf]
      %v419 = vld [vmem:[#allocation8 + $0x28] sm:$0xf]
      %v420 = vld [vmem:[#allocation8 + $0x2c] sm:$0xf]
      %v421 = vld [vmem:[#allocation8 + $0x30] sm:$0xf]
      %v422 = vld [vmem:[#allocation8 + $0x34] sm:$0xf]
      %v423 = vld [vmem:[#allocation8 + $0x38] sm:$0xf]
      %v424 = vld [vmem:[#allocation8 + $0x3c] sm:$0xf]
      %v425 = vld [vmem:[#allocation9] sm:$0xf]
      %v426 = vld [vmem:[#allocation9 + $0x4] sm:$0xf]
      %v427 = vld [vmem:[#allocation9 + $0x8] sm:$0xf]
      %v428 = vld [vmem:[#allocation9 + $0xc] sm:$0xf]
      %v429 = vld [vmem:[#allocation9 + $0x10] sm:$0xf]
      %v430 = vld [vmem:[#allocation9 + $0x14] sm:$0xf]
      %v431 = vld [vmem:[#allocation9 + $0x18] sm:$0xf]
      %v432 = vld [vmem:[#allocation9 + $0x1c] sm:$0xf]
      %v433 = vld [vmem:[#allocation9 + $0x20] sm:$0xf]
      %v434 = vld [vmem:[#allocation9 + $0x24] sm:$0xf]
      %v435 = vld [vmem:[#allocation9 + $0x28] sm:$0xf]
      %v436 = vld [vmem:[#allocation9 + $0x2c] sm:$0xf]
      %v437 = vld [vmem:[#allocation9 + $0x30] sm:$0xf]
      %v438 = vld [vmem:[#allocation9 + $0x34] sm:$0xf]
      %v439 = vld [vmem:[#allocation9 + $0x38] sm:$0xf]
      %v440 = vld [vmem:[#allocation9 + $0x3c] sm:$0xf]
      %v441 = vld [vmem:[#allocation2] sm:$0xff]
      %v442 = vld [vmem:[#allocation2 + $0x8] sm:$0xff]
      %v443 = vld [vmem:[#allocation2 + $0x10] sm:$0xff]
      %v444 = vld [vmem:[#allocation2 + $0x18] sm:$0xff]
      %v445 = vld [vmem:[#allocation2 + $0x20] sm:$0xff]
      %v446 = vld [vmem:[#allocation2 + $0x28] sm:$0xff]
      %v447 = vld [vmem:[#allocation2 + $0x30] sm:$0xff]
      %v448 = vld [vmem:[#allocation2 + $0x38] sm:$0xff]
      %v449 = vld [vmem:[#allocation2 + $0x40] sm:$0xff]
      %v450 = vld [vmem:[#allocation2 + $0x48] sm:$0xff]
      %v451 = vld [vmem:[#allocation2 + $0x50] sm:$0xff]
      %v452 = vld [vmem:[#allocation2 + $0x58] sm:$0xff]
      %v453 = vld [vmem:[#allocation2 + $0x60] sm:$0xff]
      %v454 = vld [vmem:[#allocation2 + $0x68] sm:$0xff]
      %v455 = vld [vmem:[#allocation2 + $0x70] sm:$0xff]
      %v456 = vld [vmem:[#allocation2 + $0x78] sm:$0xff]
      %v457 = vpack.c.bf16 %v442, %v441
      %v458 = vpack.c.bf16 %v444, %v443
      %v459 = vpack.c.bf16 %v446, %v445
      %v460 = vpack.c.bf16 %v448, %v447
      %v461 = vpack.c.bf16 %v450, %v449
      %v462 = vpack.c.bf16 %v452, %v451
      %v463 = vpack.c.bf16 %v454, %v453
      %v464 = vpack.c.bf16 %v456, %v455
      %v465 = vld [vmem:[#allocation11] sm:$0xf]
      %v466 = vld [vmem:[#allocation11 + $0x4] sm:$0xf]
      %v467 = vld [vmem:[#allocation11 + $0x8] sm:$0xf]
      %v468 = vld [vmem:[#allocation11 + $0xc] sm:$0xf]
      %v469 = vld [vmem:[#allocation11 + $0x10] sm:$0xf]
      %v470 = vld [vmem:[#allocation11 + $0x14] sm:$0xf]
      %v471 = vld [vmem:[#allocation11 + $0x18] sm:$0xf]
      %v472 = vld [vmem:[#allocation11 + $0x1c] sm:$0xf]
      %v473 = vld [vmem:[#allocation11 + $0x20] sm:$0xf]
      %v474 = vld [vmem:[#allocation11 + $0x24] sm:$0xf]
      %v475 = vld [vmem:[#allocation11 + $0x28] sm:$0xf]
      %v476 = vld [vmem:[#allocation11 + $0x2c] sm:$0xf]
      %v477 = vld [vmem:[#allocation11 + $0x30] sm:$0xf]
      %v478 = vld [vmem:[#allocation11 + $0x34] sm:$0xf]
      %v479 = vld [vmem:[#allocation11 + $0x38] sm:$0xf]
      %v480 = vld [vmem:[#allocation11 + $0x3c] sm:$0xf]
      %v497 = vunpack.c.l.b16 %v465
      %v498 = vunpack.c.l.b16 %v466
      %v499 = vunpack.c.l.b16 %v467
      %v500 = vunpack.c.l.b16 %v468
      %v501 = vunpack.c.l.b16 %v469
      %v502 = vunpack.c.l.b16 %v470
      %v503 = vunpack.c.l.b16 %v471
      %v504 = vunpack.c.l.b16 %v472
      %v505 = vunpack.c.l.b16 %v473
      %v506 = vunpack.c.l.b16 %v474
      %v507 = vunpack.c.l.b16 %v475
      %v508 = vunpack.c.l.b16 %v476
      %v509 = vunpack.c.l.b16 %v477
      %v510 = vunpack.c.l.b16 %v478
      %v511 = vunpack.c.l.b16 %v479
      %v512 = vunpack.c.l.b16 %v480
      %v513 = vpack.c.b16 %v498, %v497
      %v514 = vpack.c.b16 %v500, %v499
      %v515 = vpack.c.b16 %v502, %v501
      %v516 = vpack.c.b16 %v504, %v503
      %v517 = vpack.c.b16 %v506, %v505
      %v518 = vpack.c.b16 %v508, %v507
      %v519 = vpack.c.b16 %v510, %v509
      %v520 = vpack.c.b16 %v512, %v511
      %529 = vmatprep.subr.bf16.mxu0 0
      %530 = vmatpush1.bf16.msra.mxu0 %v513
      %531 = vmatprep.subr.bf16.mxu0 0
      %532 = vmatpush1.bf16.msra.mxu0 %v514
      %533 = vmatprep.subr.bf16.mxu0 0
      %534 = vmatpush1.bf16.msra.mxu0 %v515
      %535 = vmatprep.subr.bf16.mxu0 0
      %536 = vmatpush1.bf16.msra.mxu0 %v516
      %537 = vmatprep.subr.bf16.mxu0 0
      %538 = vmatpush1.bf16.msra.mxu0 %v517
      %539 = vmatprep.subr.bf16.mxu0 0
      %540 = vmatpush1.bf16.msra.mxu0 %v518
      %541 = vmatprep.subr.bf16.mxu0 0
      %542 = vmatpush1.bf16.msra.mxu0 %v519
      %543 = vmatprep.subr.bf16.mxu0 0
      %544 = vmatpush1.bf16.msra.mxu0 %v520
      %545 = vmatprep.subr.bf16.mxu0 0
      %546 = vmatpush1.bf16.msra.mxu0 0
      %547 = vmatprep.subr.bf16.mxu0 0
      %548 = vmatpush1.bf16.msra.mxu0 0
      %549 = vmatprep.subr.bf16.mxu0 0
      %550 = vmatpush1.bf16.msra.mxu0 0
      %551 = vmatprep.subr.bf16.mxu0 0
      %552 = vmatpush1.bf16.msra.mxu0 0
      %553 = vmatprep.subr.bf16.mxu0 0
      %554 = vmatpush1.bf16.msra.mxu0 0
      %555 = vmatprep.subr.bf16.mxu0 0
      %556 = vmatpush1.bf16.msra.mxu0 0
      %557 = vmatprep.subr.bf16.mxu0 0
      %558 = vmatpush1.bf16.msra.mxu0 0
      %559 = vmatprep.subr.bf16.mxu0 0
      %560 = vmatpush1.bf16.msra.mxu0 0
      %561 = vmatprep.mubr.bf16.mxu0 0
      %562 = vmatmul.mubr.bf16.gmra.mrb[0].mxu0 %v457
      %v563 = vpop.f32.mrb[0].mxu0
      %v564 = vadd.f32 0.0, %v563
      %v565 = vpop.f32.mrb[0].mxu0
      %v566 = vpop.f32.mrb[0].mxu0
      %v567 = vadd.f32 0.0, %v566
      %v568 = vpop.f32.mrb[0].mxu0
      %569 = vmatprep.mubr.bf16.mxu0 0
      %570 = vmatmul.mubr.bf16.gmra.mrb[0].mxu0 %v458
      %v571 = vpop.f32.mrb[0].mxu0
      %v572 = vadd.f32 0.0, %v571
      %v573 = vpop.f32.mrb[0].mxu0
      %v574 = vpop.f32.mrb[0].mxu0
      %v575 = vadd.f32 0.0, %v574
      %v576 = vpop.f32.mrb[0].mxu0
      %577 = vmatprep.mubr.bf16.mxu0 0
      %578 = vmatmul.mubr.bf16.gmra.mrb[0].mxu0 %v459
      %v579 = vpop.f32.mrb[0].mxu0
      %v580 = vadd.f32 0.0, %v579
      %v581 = vpop.f32.mrb[0].mxu0
      %v582 = vpop.f32.mrb[0].mxu0
      %v583 = vadd.f32 0.0, %v582
      %v584 = vpop.f32.mrb[0].mxu0
      %585 = vmatprep.mubr.bf16.mxu0 0
      %586 = vmatmul.mubr.bf16.gmra.mrb[0].mxu0 %v460
      %v587 = vpop.f32.mrb[0].mxu0
      %v588 = vadd.f32 0.0, %v587
      %v589 = vpop.f32.mrb[0].mxu0
      %v590 = vpop.f32.mrb[0].mxu0
      %v591 = vadd.f32 0.0, %v590
      %v592 = vpop.f32.mrb[0].mxu0
      %593 = vmatprep.mubr.bf16.mxu0 0
      %594 = vmatmul.mubr.bf16.gmra.mrb[0].mxu0 %v461
      %v595 = vpop.f32.mrb[0].mxu0
      %v596 = vadd.f32 0.0, %v595
      %v597 = vpop.f32.mrb[0].mxu0
      %v598 = vpop.f32.mrb[0].mxu0
      %v599 = vadd.f32 0.0, %v598
      %v600 = vpop.f32.mrb[0].mxu0
      %601 = vmatprep.mubr.bf16.mxu0 0
      %602 = vmatmul.mubr.bf16.gmra.mrb[0].mxu0 %v462
      %v603 = vpop.f32.mrb[0].mxu0
      %v604 = vadd.f32 0.0, %v603
      %v605 = vpop.f32.mrb[0].mxu0
      %v606 = vpop.f32.mrb[0].mxu0
      %v607 = vadd.f32 0.0, %v606
      %v608 = vpop.f32.mrb[0].mxu0
      %609 = vmatprep.mubr.bf16.mxu0 0
      %610 = vmatmul.mubr.bf16.gmra.mrb[0].mxu0 %v463
      %v611 = vpop.f32.mrb[0].mxu0
      %v612 = vadd.f32 0.0, %v611
      %v613 = vpop.f32.mrb[0].mxu0
      %v614 = vpop.f32.mrb[0].mxu0
      %v615 = vadd.f32 0.0, %v614
      %v616 = vpop.f32.mrb[0].mxu0
      %617 = vmatprep.mubr.bf16.mxu0 0
      %618 = vmatmul.mubr.bf16.gmra.mrb[0].mxu0 %v464
      %v619 = vpop.f32.mrb[0].mxu0
      %v620 = vadd.f32 0.0, %v619
      %v621 = vpop.f32.mrb[0].mxu0
      %v622 = vpop.f32.mrb[0].mxu0
      %v623 = vadd.f32 0.0, %v622
      %v624 = vpop.f32.mrb[0].mxu0
      %625 = vdwg.mxu0
      %v642 = vunpack.c.l.b16 %v409
      %v643 = vunpack.c.l.b16 %v410
      %v644 = vunpack.c.l.b16 %v411
      %v645 = vunpack.c.l.b16 %v412
      %v646 = vunpack.c.l.b16 %v413
      %v647 = vunpack.c.l.b16 %v414
      %v648 = vunpack.c.l.b16 %v415
      %v649 = vunpack.c.l.b16 %v416
      %v650 = vunpack.c.l.b16 %v417
      %v651 = vunpack.c.l.b16 %v418
      %v652 = vunpack.c.l.b16 %v419
      %v653 = vunpack.c.l.b16 %v420
      %v654 = vunpack.c.l.b16 %v421
      %v655 = vunpack.c.l.b16 %v422
      %v656 = vunpack.c.l.b16 %v423
      %v657 = vunpack.c.l.b16 %v424
      %v658 = vpack.c.b16 %v643, %v642
      %v659 = vpack.c.b16 %v645, %v644
      %v660 = vpack.c.b16 %v647, %v646
      %v661 = vpack.c.b16 %v649, %v648
      %v662 = vpack.c.b16 %v651, %v650
      %v663 = vpack.c.b16 %v653, %v652
      %v664 = vpack.c.b16 %v655, %v654
      %v665 = vpack.c.b16 %v657, %v656
      %v690 = vunpack.c.l.b16 %v425
      %v691 = vunpack.c.l.b16 %v426
      %v692 = vunpack.c.l.b16 %v427
      %v693 = vunpack.c.l.b16 %v428
      %v694 = vunpack.c.l.b16 %v429
      %v695 = vunpack.c.l.b16 %v430
      %v696 = vunpack.c.l.b16 %v431
      %v697 = vunpack.c.l.b16 %v432
      %v698 = vunpack.c.l.b16 %v433
      %v699 = vunpack.c.l.b16 %v434
      %v700 = vunpack.c.l.b16 %v435
      %v701 = vunpack.c.l.b16 %v436
      %v702 = vunpack.c.l.b16 %v437
      %v703 = vunpack.c.l.b16 %v438
      %v704 = vunpack.c.l.b16 %v439
      %v705 = vunpack.c.l.b16 %v440
      %v706 = vpack.c.b16 %v691, %v690
      %v707 = vpack.c.b16 %v693, %v692
      %v708 = vpack.c.b16 %v695, %v694
      %v709 = vpack.c.b16 %v697, %v696
      %v710 = vpack.c.b16 %v699, %v698
      %v711 = vpack.c.b16 %v701, %v700
      %v712 = vpack.c.b16 %v703, %v702
      %v713 = vpack.c.b16 %v705, %v704
      %722 = vmatprep.subr.bf16.mxu0 0
      %723 = vmatpush1.bf16.msra.mxu0 %v706
      %724 = vmatprep.subr.bf16.mxu0 0
      %725 = vmatpush1.bf16.msra.mxu0 %v707
      %726 = vmatprep.subr.bf16.mxu0 0
      %727 = vmatpush1.bf16.msra.mxu0 %v708
      %728 = vmatprep.subr.bf16.mxu0 0
      %729 = vmatpush1.bf16.msra.mxu0 %v709
      %730 = vmatprep.subr.bf16.mxu0 0
      %731 = vmatpush1.bf16.msra.mxu0 %v710
      %732 = vmatprep.subr.bf16.mxu0 0
      %733 = vmatpush1.bf16.msra.mxu0 %v711
      %734 = vmatprep.subr.bf16.mxu0 0
      %735 = vmatpush1.bf16.msra.mxu0 %v712
      %736 = vmatprep.subr.bf16.mxu0 0
      %737 = vmatpush1.bf16.msra.mxu0 %v713
      %738 = vmatprep.subr.bf16.mxu0 0
      %739 = vmatpush1.bf16.msra.mxu0 0
      %740 = vmatprep.subr.bf16.mxu0 0
      %741 = vmatpush1.bf16.msra.mxu0 0
      %742 = vmatprep.subr.bf16.mxu0 0
      %743 = vmatpush1.bf16.msra.mxu0 0
      %744 = vmatprep.subr.bf16.mxu0 0
      %745 = vmatpush1.bf16.msra.mxu0 0
      %746 = vmatprep.subr.bf16.mxu0 0
      %747 = vmatpush1.bf16.msra.mxu0 0
      %748 = vmatprep.subr.bf16.mxu0 0
      %749 = vmatpush1.bf16.msra.mxu0 0
      %750 = vmatprep.subr.bf16.mxu0 0
      %751 = vmatpush1.bf16.msra.mxu0 0
      %752 = vmatprep.subr.bf16.mxu0 0
      %753 = vmatpush1.bf16.msra.mxu0 0
      %754 = vmatprep.mubr.bf16.mxu0 0
      %755 = vmatmul.mubr.bf16.gmra.mrb[0].mxu0 %v658
      %v756 = vpop.f32.mrb[0].mxu0
      %v757 = vadd.f32 %v564, %v756
      %v758 = vpop.f32.mrb[0].mxu0
      %v759 = vpop.f32.mrb[0].mxu0
      %v760 = vadd.f32 %v567, %v759
      %v761 = vpop.f32.mrb[0].mxu0
      %762 = vmatprep.mubr.bf16.mxu0 0
      %763 = vmatmul.mubr.bf16.gmra.mrb[0].mxu0 %v659
      %v764 = vpop.f32.mrb[0].mxu0
      %v765 = vadd.f32 %v572, %v764
      %v766 = vpop.f32.mrb[0].mxu0
      %v767 = vpop.f32.mrb[0].mxu0
      %v768 = vadd.f32 %v575, %v767
      %v769 = vpop.f32.mrb[0].mxu0
      %770 = vmatprep.mubr.bf16.mxu0 0
      %771 = vmatmul.mubr.bf16.gmra.mrb[0].mxu0 %v660
      %v772 = vpop.f32.mrb[0].mxu0
      %v773 = vadd.f32 %v580, %v772
      %v774 = vpop.f32.mrb[0].mxu0
      %v775 = vpop.f32.mrb[0].mxu0
      %v776 = vadd.f32 %v583, %v775
      %v777 = vpop.f32.mrb[0].mxu0
      %778 = vmatprep.mubr.bf16.mxu0 0
      %779 = vmatmul.mubr.bf16.gmra.mrb[0].mxu0 %v661
      %v780 = vpop.f32.mrb[0].mxu0
      %v781 = vadd.f32 %v588, %v780
      %v782 = vpop.f32.mrb[0].mxu0
      %v783 = vpop.f32.mrb[0].mxu0
      %v784 = vadd.f32 %v591, %v783
      %v785 = vpop.f32.mrb[0].mxu0
      %786 = vmatprep.mubr.bf16.mxu0 0
      %787 = vmatmul.mubr.bf16.gmra.mrb[0].mxu0 %v662
      %v788 = vpop.f32.mrb[0].mxu0
      %v789 = vadd.f32 %v596, %v788
      %v790 = vpop.f32.mrb[0].mxu0
      %v791 = vpop.f32.mrb[0].mxu0
      %v792 = vadd.f32 %v599, %v791
      %v793 = vpop.f32.mrb[0].mxu0
      %794 = vmatprep.mubr.bf16.mxu0 0
      %795 = vmatmul.mubr.bf16.gmra.mrb[0].mxu0 %v663
      %v796 = vpop.f32.mrb[0].mxu0
      %v797 = vadd.f32 %v604, %v796
      %v798 = vpop.f32.mrb[0].mxu0
      %v799 = vpop.f32.mrb[0].mxu0
      %v800 = vadd.f32 %v607, %v799
      %v801 = vpop.f32.mrb[0].mxu0
      %802 = vmatprep.mubr.bf16.mxu0 0
      %803 = vmatmul.mubr.bf16.gmra.mrb[0].mxu0 %v664
      %v804 = vpop.f32.mrb[0].mxu0
      %v805 = vadd.f32 %v612, %v804
      %v806 = vpop.f32.mrb[0].mxu0
      %v807 = vpop.f32.mrb[0].mxu0
      %v808 = vadd.f32 %v615, %v807
      %v809 = vpop.f32.mrb[0].mxu0
      %810 = vmatprep.mubr.bf16.mxu0 0
      %811 = vmatmul.mubr.bf16.gmra.mrb[0].mxu0 %v665
      %v812 = vpop.f32.mrb[0].mxu0
      %v813 = vadd.f32 %v620, %v812
      %v814 = vpop.f32.mrb[0].mxu0
      %v815 = vpop.f32.mrb[0].mxu0
      %v816 = vadd.f32 %v623, %v815
      %v817 = vpop.f32.mrb[0].mxu0
      %818 = vdwg.mxu0
      %v819 = vld [vmem:[%s6] sm:$0x1]
      %v821 = vlaneseq
      %v822 = vshrl.u32 %v821, 7
      %v823 = vsub.s32 0, %v822
      %v824 = vrot.slane %v819, %v823
      %v826 = vadd.f32 %v757, %v824
      %v827 = vadd.f32 %v760, %v824
      %v828 = vadd.f32 %v765, %v824
      %v829 = vadd.f32 %v768, %v824
      %v830 = vadd.f32 %v773, %v824
      %v831 = vadd.f32 %v776, %v824
      %v832 = vadd.f32 %v781, %v824
      %v833 = vadd.f32 %v784, %v824
      %v834 = vadd.f32 %v789, %v824
      %v835 = vadd.f32 %v792, %v824
      %v836 = vadd.f32 %v797, %v824
      %v837 = vadd.f32 %v800, %v824
      %v838 = vadd.f32 %v805, %v824
      %v839 = vadd.f32 %v808, %v824
      %v840 = vadd.f32 %v813, %v824
      %v841 = vadd.f32 %v816, %v824
      %v842 = vmax.f32 %v826, 0.0
      %v843 = vmax.f32 %v827, 0.0
      %v844 = vmax.f32 %v828, 0.0
      %v845 = vmax.f32 %v829, 0.0
      %v846 = vmax.f32 %v830, 0.0
      %v847 = vmax.f32 %v831, 0.0
      %v848 = vmax.f32 %v832, 0.0
      %v849 = vmax.f32 %v833, 0.0
      %v850 = vmax.f32 %v834, 0.0
      %v851 = vmax.f32 %v835, 0.0
      %v852 = vmax.f32 %v836, 0.0
      %v853 = vmax.f32 %v837, 0.0
      %v854 = vmax.f32 %v838, 0.0
      %v855 = vmax.f32 %v839, 0.0
      %v856 = vmax.f32 %v840, 0.0
      %v857 = vmax.f32 %v841, 0.0
      %v858 = vpack.c.bf16 %v843, %v842
      %v859 = vpack.c.bf16 %v845, %v844
      %v860 = vpack.c.bf16 %v847, %v846
      %v861 = vpack.c.bf16 %v849, %v848
      %v862 = vpack.c.bf16 %v851, %v850
      %v863 = vpack.c.bf16 %v853, %v852
      %v864 = vpack.c.bf16 %v855, %v854
      %v865 = vpack.c.bf16 %v857, %v856
      %v874 = vunpack.c.l.b16 %v858
      %v875 = vunpack.c.h.b16 %v858
      %v876 = vunpack.c.l.b16 %v859
      %v877 = vunpack.c.h.b16 %v859
      %v878 = vunpack.c.l.b16 %v860
      %v879 = vunpack.c.h.b16 %v860
      %v880 = vunpack.c.l.b16 %v861
      %v881 = vunpack.c.h.b16 %v861
      %v882 = vunpack.c.l.b16 %v862
      %v883 = vunpack.c.h.b16 %v862
      %v884 = vunpack.c.l.b16 %v863
      %v885 = vunpack.c.h.b16 %v863
      %v886 = vunpack.c.l.b16 %v864
      %v887 = vunpack.c.h.b16 %v864
      %v888 = vunpack.c.l.b16 %v865
      %v889 = vunpack.c.h.b16 %v865
      %v890 = vpack.c.b16 %v874, %v874
      %v891 = vpack.c.b16 %v875, %v875
      %v892 = vpack.c.b16 %v876, %v876
      %v893 = vpack.c.b16 %v877, %v877
      %v894 = vpack.c.b16 %v878, %v878
      %v895 = vpack.c.b16 %v879, %v879
      %v896 = vpack.c.b16 %v880, %v880
      %v897 = vpack.c.b16 %v881, %v881
      %v898 = vpack.c.b16 %v882, %v882
      %v899 = vpack.c.b16 %v883, %v883
      %v900 = vpack.c.b16 %v884, %v884
      %v901 = vpack.c.b16 %v885, %v885
      %v902 = vpack.c.b16 %v886, %v886
      %v903 = vpack.c.b16 %v887, %v887
      %v904 = vpack.c.b16 %v888, %v888
      %v905 = vpack.c.b16 %v889, %v889
      %922 = vst [vmem:[#allocation14] sm:$0xf] %v890
      %923 = vst [vmem:[#allocation14 + $0x4] sm:$0xf] %v891
      %924 = vst [vmem:[#allocation14 + $0x8] sm:$0xf] %v892
      %925 = vst [vmem:[#allocation14 + $0xc] sm:$0xf] %v893
      %926 = vst [vmem:[#allocation14 + $0x10] sm:$0xf] %v894
      %927 = vst [vmem:[#allocation14 + $0x14] sm:$0xf] %v895
      %928 = vst [vmem:[#allocation14 + $0x18] sm:$0xf] %v896
      %929 = vst [vmem:[#allocation14 + $0x1c] sm:$0xf] %v897
      %930 = vst [vmem:[#allocation14 + $0x20] sm:$0xf] %v898
      %931 = vst [vmem:[#allocation14 + $0x24] sm:$0xf] %v899
      %932 = vst [vmem:[#allocation14 + $0x28] sm:$0xf] %v900
      %933 = vst [vmem:[#allocation14 + $0x2c] sm:$0xf] %v901
      %934 = vst [vmem:[#allocation14 + $0x30] sm:$0xf] %v902
      %935 = vst [vmem:[#allocation14 + $0x34] sm:$0xf] %v903
      %936 = vst [vmem:[#allocation14 + $0x38] sm:$0xf] %v904
      %937 = vst [vmem:[#allocation14 + $0x3c] sm:$0xf] %v905
      %v938 = vld [vmem:[#allocation12] sm:$0xf]
      %v939 = vld [vmem:[#allocation12 + $0x4] sm:$0xf]
      %v940 = vld [vmem:[#allocation12 + $0x8] sm:$0xf]
      %v941 = vld [vmem:[#allocation12 + $0xc] sm:$0xf]
      %v942 = vld [vmem:[#allocation12 + $0x10] sm:$0xf]
      %v943 = vld [vmem:[#allocation12 + $0x14] sm:$0xf]
      %v944 = vld [vmem:[#allocation12 + $0x18] sm:$0xf]
      %v945 = vld [vmem:[#allocation12 + $0x1c] sm:$0xf]
      %v946 = vld [vmem:[#allocation12 + $0x20] sm:$0xf]
      %v947 = vld [vmem:[#allocation12 + $0x24] sm:$0xf]
      %v948 = vld [vmem:[#allocation12 + $0x28] sm:$0xf]
      %v949 = vld [vmem:[#allocation12 + $0x2c] sm:$0xf]
      %v950 = vld [vmem:[#allocation12 + $0x30] sm:$0xf]
      %v951 = vld [vmem:[#allocation12 + $0x34] sm:$0xf]
      %v952 = vld [vmem:[#allocation12 + $0x38] sm:$0xf]
      %v953 = vld [vmem:[#allocation12 + $0x3c] sm:$0xf]
      %v970 = vunpack.c.l.b16 %v938
      %v971 = vunpack.c.l.b16 %v939
      %v972 = vunpack.c.l.b16 %v940
      %v973 = vunpack.c.l.b16 %v941
      %v974 = vunpack.c.l.b16 %v942
      %v975 = vunpack.c.l.b16 %v943
      %v976 = vunpack.c.l.b16 %v944
      %v977 = vunpack.c.l.b16 %v945
      %v978 = vunpack.c.l.b16 %v946
      %v979 = vunpack.c.l.b16 %v947
      %v980 = vunpack.c.l.b16 %v948
      %v981 = vunpack.c.l.b16 %v949
      %v982 = vunpack.c.l.b16 %v950
      %v983 = vunpack.c.l.b16 %v951
      %v984 = vunpack.c.l.b16 %v952
      %v985 = vunpack.c.l.b16 %v953
      %v986 = vpack.c.b16 %v971, %v970
      %v987 = vpack.c.b16 %v973, %v972
      %v988 = vpack.c.b16 %v975, %v974
      %v989 = vpack.c.b16 %v977, %v976
      %v990 = vpack.c.b16 %v979, %v978
      %v991 = vpack.c.b16 %v981, %v980
      %v992 = vpack.c.b16 %v983, %v982
      %v993 = vpack.c.b16 %v985, %v984
      %1002 = vmatprep.subr.bf16.mxu0 0
      %1003 = vmatpush1.bf16.msra.mxu0 %v986
      %1004 = vmatprep.subr.bf16.mxu0 0
      %1005 = vmatpush1.bf16.msra.mxu0 %v987
      %1006 = vmatprep.subr.bf16.mxu0 0
      %1007 = vmatpush1.bf16.msra.mxu0 %v988
      %1008 = vmatprep.subr.bf16.mxu0 0
      %1009 = vmatpush1.bf16.msra.mxu0 %v989
      %1010 = vmatprep.subr.bf16.mxu0 0
      %1011 = vmatpush1.bf16.msra.mxu0 %v990
      %1012 = vmatprep.subr.bf16.mxu0 0
      %1013 = vmatpush1.bf16.msra.mxu0 %v991
      %1014 = vmatprep.subr.bf16.mxu0 0
      %1015 = vmatpush1.bf16.msra.mxu0 %v992
      %1016 = vmatprep.subr.bf16.mxu0 0
      %1017 = vmatpush1.bf16.msra.mxu0 %v993
      %1018 = vmatprep.subr.bf16.mxu0 0
      %1019 = vmatpush1.bf16.msra.mxu0 0
      %1020 = vmatprep.subr.bf16.mxu0 0
      %1021 = vmatpush1.bf16.msra.mxu0 0
      %1022 = vmatprep.subr.bf16.mxu0 0
      %1023 = vmatpush1.bf16.msra.mxu0 0
      %1024 = vmatprep.subr.bf16.mxu0 0
      %1025 = vmatpush1.bf16.msra.mxu0 0
      %1026 = vmatprep.subr.bf16.mxu0 0
      %1027 = vmatpush1.bf16.msra.mxu0 0
      %1028 = vmatprep.subr.bf16.mxu0 0
      %1029 = vmatpush1.bf16.msra.mxu0 0
      %1030 = vmatprep.subr.bf16.mxu0 0
      %1031 = vmatpush1.bf16.msra.mxu0 0
      %1032 = vmatprep.subr.bf16.mxu0 0
      %1033 = vmatpush1.bf16.msra.mxu0 0
      %1034 = vmatprep.mubr.bf16.mxu0 0
      %1035 = vmatmul.mubr.bf16.gmra.mrb[0].mxu0 %v858
      %v1036 = vpop.f32.mrb[0].mxu0
      %v1037 = vadd.f32 0.0, %v1036
      %v1038 = vpop.f32.mrb[0].mxu0
      %v1039 = vpop.f32.mrb[0].mxu0
      %v1040 = vadd.f32 0.0, %v1039
      %v1041 = vpop.f32.mrb[0].mxu0
      %1042 = vmatprep.mubr.bf16.mxu0 0
      %1043 = vmatmul.mubr.bf16.gmra.mrb[0].mxu0 %v859
      %v1044 = vpop.f32.mrb[0].mxu0
      %v1045 = vadd.f32 0.0, %v1044
      %v1046 = vpop.f32.mrb[0].mxu0
      %v1047 = vpop.f32.mrb[0].mxu0
      %v1048 = vadd.f32 0.0, %v1047
      %v1049 = vpop.f32.mrb[0].mxu0
      %1050 = vmatprep.mubr.bf16.mxu0 0
      %1051 = vmatmul.mubr.bf16.gmra.mrb[0].mxu0 %v860
      %v1052 = vpop.f32.mrb[0].mxu0
      %v1053 = vadd.f32 0.0, %v1052
      %v1054 = vpop.f32.mrb[0].mxu0
      %v1055 = vpop.f32.mrb[0].mxu0
      %v1056 = vadd.f32 0.0, %v1055
      %v1057 = vpop.f32.mrb[0].mxu0
      %1058 = vmatprep.mubr.bf16.mxu0 0
      %1059 = vmatmul.mubr.bf16.gmra.mrb[0].mxu0 %v861
      %v1060 = vpop.f32.mrb[0].mxu0
      %v1061 = vadd.f32 0.0, %v1060
      %v1062 = vpop.f32.mrb[0].mxu0
      %v1063 = vpop.f32.mrb[0].mxu0
      %v1064 = vadd.f32 0.0, %v1063
      %v1065 = vpop.f32.mrb[0].mxu0
      %1066 = vmatprep.mubr.bf16.mxu0 0
      %1067 = vmatmul.mubr.bf16.gmra.mrb[0].mxu0 %v862
      %v1068 = vpop.f32.mrb[0].mxu0
      %v1069 = vadd.f32 0.0, %v1068
      %v1070 = vpop.f32.mrb[0].mxu0
      %v1071 = vpop.f32.mrb[0].mxu0
      %v1072 = vadd.f32 0.0, %v1071
      %v1073 = vpop.f32.mrb[0].mxu0
      %1074 = vmatprep.mubr.bf16.mxu0 0
      %1075 = vmatmul.mubr.bf16.gmra.mrb[0].mxu0 %v863
      %v1076 = vpop.f32.mrb[0].mxu0
      %v1077 = vadd.f32 0.0, %v1076
      %v1078 = vpop.f32.mrb[0].mxu0
      %v1079 = vpop.f32.mrb[0].mxu0
      %v1080 = vadd.f32 0.0, %v1079
      %v1081 = vpop.f32.mrb[0].mxu0
      %1082 = vmatprep.mubr.bf16.mxu0 0
      %1083 = vmatmul.mubr.bf16.gmra.mrb[0].mxu0 %v864
      %v1084 = vpop.f32.mrb[0].mxu0
      %v1085 = vadd.f32 0.0, %v1084
      %v1086 = vpop.f32.mrb[0].mxu0
      %v1087 = vpop.f32.mrb[0].mxu0
      %v1088 = vadd.f32 0.0, %v1087
      %v1089 = vpop.f32.mrb[0].mxu0
      %1090 = vmatprep.mubr.bf16.mxu0 0
      %1091 = vmatmul.mubr.bf16.gmra.mrb[0].mxu0 %v865
      %v1092 = vpop.f32.mrb[0].mxu0
      %v1093 = vadd.f32 0.0, %v1092
      %v1094 = vpop.f32.mrb[0].mxu0
      %v1095 = vpop.f32.mrb[0].mxu0
      %v1096 = vadd.f32 0.0, %v1095
      %v1097 = vpop.f32.mrb[0].mxu0
      %1098 = vdwg.mxu0
      %v1099 = vpack.c.bf16 %v1040, %v1037
      %v1100 = vpack.c.bf16 %v1048, %v1045
      %v1101 = vpack.c.bf16 %v1056, %v1053
      %v1102 = vpack.c.bf16 %v1064, %v1061
      %v1103 = vpack.c.bf16 %v1072, %v1069
      %v1104 = vpack.c.bf16 %v1080, %v1077
      %v1105 = vpack.c.bf16 %v1088, %v1085
      %v1106 = vpack.c.bf16 %v1096, %v1093
      %v1115 = vunpack.c.l.b16 %v1099
      %v1116 = vunpack.c.h.b16 %v1099
      %v1117 = vunpack.c.l.b16 %v1100
      %v1118 = vunpack.c.h.b16 %v1100
      %v1119 = vunpack.c.l.b16 %v1101
      %v1120 = vunpack.c.h.b16 %v1101
      %v1121 = vunpack.c.l.b16 %v1102
      %v1122 = vunpack.c.h.b16 %v1102
      %v1123 = vunpack.c.l.b16 %v1103
      %v1124 = vunpack.c.h.b16 %v1103
      %v1125 = vunpack.c.l.b16 %v1104
      %v1126 = vunpack.c.h.b16 %v1104
      %v1127 = vunpack.c.l.b16 %v1105
      %v1128 = vunpack.c.h.b16 %v1105
      %v1129 = vunpack.c.l.b16 %v1106
      %v1130 = vunpack.c.h.b16 %v1106
      %v1131 = vpack.c.b16 %v1115, %v1115
      %v1132 = vpack.c.b16 %v1116, %v1116
      %v1133 = vpack.c.b16 %v1117, %v1117
      %v1134 = vpack.c.b16 %v1118, %v1118
      %v1135 = vpack.c.b16 %v1119, %v1119
      %v1136 = vpack.c.b16 %v1120, %v1120
      %v1137 = vpack.c.b16 %v1121, %v1121
      %v1138 = vpack.c.b16 %v1122, %v1122
      %v1139 = vpack.c.b16 %v1123, %v1123
      %v1140 = vpack.c.b16 %v1124, %v1124
      %v1141 = vpack.c.b16 %v1125, %v1125
      %v1142 = vpack.c.b16 %v1126, %v1126
      %v1143 = vpack.c.b16 %v1127, %v1127
      %v1144 = vpack.c.b16 %v1128, %v1128
      %v1145 = vpack.c.b16 %v1129, %v1129
      %v1146 = vpack.c.b16 %v1130, %v1130
      %1163 = vst [vmem:[#allocation15] sm:$0xf] %v1131
      %1164 = vst [vmem:[#allocation15 + $0x4] sm:$0xf] %v1132
      %1165 = vst [vmem:[#allocation15 + $0x8] sm:$0xf] %v1133
      %1166 = vst [vmem:[#allocation15 + $0xc] sm:$0xf] %v1134
      %1167 = vst [vmem:[#allocation15 + $0x10] sm:$0xf] %v1135
      %1168 = vst [vmem:[#allocation15 + $0x14] sm:$0xf] %v1136
      %1169 = vst [vmem:[#allocation15 + $0x18] sm:$0xf] %v1137
      %1170 = vst [vmem:[#allocation15 + $0x1c] sm:$0xf] %v1138
      %1171 = vst [vmem:[#allocation15 + $0x20] sm:$0xf] %v1139
      %1172 = vst [vmem:[#allocation15 + $0x24] sm:$0xf] %v1140
      %1173 = vst [vmem:[#allocation15 + $0x28] sm:$0xf] %v1141
      %1174 = vst [vmem:[#allocation15 + $0x2c] sm:$0xf] %v1142
      %1175 = vst [vmem:[#allocation15 + $0x30] sm:$0xf] %v1143
      %1176 = vst [vmem:[#allocation15 + $0x34] sm:$0xf] %v1144
      %1177 = vst [vmem:[#allocation15 + $0x38] sm:$0xf] %v1145
      %1178 = vst [vmem:[#allocation15 + $0x3c] sm:$0xf] %v1146
    $region61: #{tpu_custom_call.1} parent=1 // pred_fallthru
      _
    // Predicated region
    $region62: #{tpu_custom_call.1} parent=1 // pred_check
      _
    $region63: #{tpu_custom_call.1} parent=1 // pred_check_branch
      %1180 = sbr.rel (0) target = $region65
    $region64: #{tpu_custom_call.1} parent=1 // pred_region
      %s1182 = ssub.s32 1024, 1024
      %1183 = vsyncadd [#allocation5], %s1182
      %s1184 = sshll.u32 [#allocation14], 4
      %s1185 = int_to_ptr.vmem [resolvable:$true] %s1184
      %1190 = dma.vmem_to_hbm [thread:$0]  %s1185, 1024, %s7, [#allocation5], 64, 64, 4
    $region65: #{tpu_custom_call.1} parent=1 // pred_fallthru
      _
    // Predicated region
    $region66: #{tpu_custom_call.1} parent=1 // pred_check
      _
    $region67: #{tpu_custom_call.1} parent=1 // pred_check_branch
      %1192 = sbr.rel (0) target = $region69
    $region68: #{tpu_custom_call.1} parent=1 // pred_region
      %s1194 = ssub.s32 1024, 1024
      %1195 = vsyncadd [#allocation16], %s1194
      %s1196 = sshll.u32 [#allocation15], 4
      %s1197 = int_to_ptr.vmem [resolvable:$true] %s1196
      %1202 = dma.vmem_to_hbm [thread:$0]  %s1197, 1024, %s8, [#allocation16], 64, 64, 4
    $region69: #{tpu_custom_call.1} parent=1 // pred_fallthru
      _
    // Predicated region
    $region70: #{tpu_custom_call.1} parent=1 // pred_check
      _
    $region71: #{tpu_custom_call.1} parent=1 // pred_check_branch
      %1204 = sbr.rel (0) target = $region73
    $region72: #{tpu_custom_call.1} parent=1 // pred_region
      %1205 = dma.done [#allocation5], 1024
    $region73: #{tpu_custom_call.1} parent=1 // pred_fallthru
      _
    // Predicated region
    $region74: #{tpu_custom_call.1} parent=1 // pred_check
      _
    $region75: #{tpu_custom_call.1} parent=1 // pred_check_branch
      %1207 = sbr.rel (0) target = $region77
    $region76: #{tpu_custom_call.1} parent=1 // pred_region
      %1208 = dma.done [#allocation16], 1024
    $region77: #{tpu_custom_call.1} parent=1 // pred_fallthru
      _
    %1209 = vsyncpa [#allocation4], 1
    %1210 = vsyncpa [#allocation7], 1
    %1211 = vsyncpa [#allocation10], 1
    %1212 = vsyncpa [#allocation13], 1
    %1213 = vsyncpa [#allocation5], 1
    %1214 = vsyncpa [#allocation16], 1

</llo_original>
